<compile_context>
chip_gen: v5e
topology: v5e:2x2
jax: 0.10.0
libtpu: 0.0.40
codegen_flags: <defaults>
</compile_context>

<pallas_src>
import math

import jax
import jax.numpy as jnp
from jax.experimental import pallas as pl
from jax.experimental.pallas import tpu as pltpu

LOG_STD_MIN = -20.0
LOG_STD_MAX = 2.0

LANE = 128
SUBLANE = 8


def _round_up(x, m):
    return (x + m - 1) // m * m


# ---------------------------------------------------------------------------
# Kernel
# ---------------------------------------------------------------------------
def behavior_kernel(x_ref, w1_ref, b1_ref, w2_ref, b2_ref, w34_ref, b34_ref,
                    mean_ref, std_ref):
    x = x_ref[...]

    # fc1 + ReLU
    h = jnp.dot(x, w1_ref[...], preferred_element_type=jnp.float32) + b1_ref[...]
    h = jnp.maximum(h, 0.0)

    # fc2 + ReLU
    h = jnp.dot(h, w2_ref[...], preferred_element_type=jnp.float32) + b2_ref[...]
    h = jnp.maximum(h, 0.0)

    # fused head: [mean | log_std] in one matmul on the MXU
    y = jnp.dot(h, w34_ref[...], preferred_element_type=jnp.float32) + b34_ref[...]

    out_pad = mean_ref.shape[-1]          # 128-aligned split point
    mean_ref[...] = y[:, :out_pad]

    log_std = jnp.clip(y[:, out_pad:], LOG_STD_MIN, LOG_STD_MAX)
    std_ref[...] = jnp.exp(log_std)       # exp -> EUP slot, effectively free


# ---------------------------------------------------------------------------
# Wrapper
# ---------------------------------------------------------------------------
def behavior_forward(x, packed_params, output_size):
    """x: (batch, input_size) f32.  Returns (mean, std), each (batch, output_size)."""
    w1, b1, w2, b2, w34, b34 = packed_params

    batch, in_features = x.shape
    in_pad = w1.shape[0]
    head_pad = w34.shape[1]
    out_pad = head_pad // 2

    # Batch tiling: round to the sublane width, cap the tile so huge batches
    # pipeline/shard across cores; tiny batches stay a single grid step.
    tile_b = min(256, _round_up(batch, SUBLANE))
    batch_pad = _round_up(batch, tile_b)

    # Zero-pad the activation slab once (lane-dense input, exact batch tiles).
    x_pad = jnp.pad(x.astype(jnp.float32),
                    ((0, batch_pad - batch), (0, in_pad - in_features)))

    grid = (batch_pad // tile_b,)

    full = lambda a: pl.BlockSpec(a.shape, lambda i: (0,) * a.ndim)

    mean_pad, std_pad = pl.pallas_call(
        behavior_kernel,
        out_shape=(
            jax.ShapeDtypeStruct((batch_pad, out_pad), jnp.float32),  # mean (padded)
            jax.ShapeDtypeStruct((batch_pad, out_pad), jnp.float32),  # std  (padded)
        ),
        grid_spec=pltpu.PrefetchScalarGridSpec(
            num_scalar_prefetch=0,
            grid=grid,
            in_specs=[
                pl.BlockSpec((tile_b, in_pad), lambda i: (i, 0)),   # x tile
                full(w1), full(b1), full(w2), full(b2),             # weights stay resident
                full(w34), full(b34),
            ],
            out_specs=[
                pl.BlockSpec((tile_b, out_pad), lambda i: (i, 0)),
                pl.BlockSpec((tile_b, out_pad), lambda i: (i, 0)),
            ],
        ),
        compiler_params=pltpu.CompilerParams(
            dimension_semantics=("parallel",),
        ),
    )(x_pad, w1, b1, w2, b2, w34, b34)

    mean = mean_pad[:batch, :output_size]
    std = std_pad[:batch, :output_size]
    return mean, std


# ---------------------------------------------------------------------------
# Parameter init (mirrors the PyTorch module) and lane-dense packing
# ---------------------------------------------------------------------------
def init_params(key, input_size, hidden, output_size):
    """fc1, fc2 : kaiming_normal_ (fan_in, gain=sqrt(2)), zero bias
       fc3, fc4 : xavier_uniform_, zero bias.
       Weights stored transposed as (in, out) for x @ W."""
    k1, k2, k3, k4 = jax.random.split(key, 4)

    def he_normal(k, fan_in, fan_out):
        std = math.sqrt(2.0) / math.sqrt(fan_in)
        return jax.random.normal(k, (fan_in, fan_out), dtype=jnp.float32) * std

    def xavier_uniform(k, fan_in, fan_out):
        bound = math.sqrt(6.0 / (fan_in + fan_out))
        return jax.random.uniform(k, (fan_in, fan_out), dtype=jnp.float32,
                                  minval=-bound, maxval=bound)

    w1 = he_normal(k1, input_size, hidden)
    b1 = jnp.zeros((1, hidden), dtype=jnp.float32)
    w2 = he_normal(k2, hidden, hidden)
    b2 = jnp.zeros((1, hidden), dtype=jnp.float32)
    w3 = xavier_uniform(k3, hidden, output_size)
    b3 = jnp.zeros((1, output_size), dtype=jnp.float32)
    w4 = xavier_uniform(k4, hidden, output_size)
    b4 = jnp.zeros((1, output_size), dtype=jnp.float32)
    return (w1, b1, w2, b2, w3, b3, w4, b4)


def pack_params(params, input_size, hidden, output_size):
    """Zero-pad all lane axes to multiples of 128 and fuse the two heads:
       w34 = [w3 (cols 0..out_pad-1) | w4 (cols out_pad..2*out_pad-1)]."""
    w1, b1, w2, b2, w3, b3, w4, b4 = params

    in_pad = _round_up(input_size, LANE)
    hid_pad = _round_up(hidden, LANE)
    out_pad = _round_up(output_size, LANE)

    def pad2(a, rows, cols):
        return jnp.pad(a, ((0, rows - a.shape[0]), (0, cols - a.shape[1])))

    w1p = pad2(w1, in_pad, hid_pad)
    b1p = pad2(b1, 1, hid_pad)
    w2p = pad2(w2, hid_pad, hid_pad)
    b2p = pad2(b2, 1, hid_pad)

    w34 = jnp.zeros((hid_pad, 2 * out_pad), dtype=jnp.float32)
    w34 = w34.at[:hidden, :output_size].set(w3)
    w34 = w34.at[:hidden, out_pad:out_pad + output_size].set(w4)
    b34 = jnp.zeros((1, 2 * out_pad), dtype=jnp.float32)
    b34 = b34.at[:, :output_size].set(b3)
    b34 = b34.at[:, out_pad:out_pad + output_size].set(b4)

    return (w1p, b1p, w2p, b2p, w34, b34)


def reference_forward(x, params):
    w1, b1, w2, b2, w3, b3, w4, b4 = params
    h = jnp.maximum(x @ w1 + b1, 0.0)
    h = jnp.maximum(h @ w2 + b2, 0.0)
    mean = h @ w3 + b3
    log_std = jnp.clip(h @ w4 + b4, LOG_STD_MIN, LOG_STD_MAX)
    return mean, jnp.exp(log_std)


if __name__ == "__main__":
    input_size, hidden, output_size = 16, 32, 8
    batch = 4

    key = jax.random.PRNGKey(0)
    k_params, k_x = jax.random.split(key)

    params = init_params(k_params, input_size, hidden, output_size)
    packed = pack_params(params, input_size, hidden, output_size)
    x = jax.random.normal(k_x, (batch, input_size), dtype=jnp.float32)

    mean, std = behavior_forward(x, packed, output_size)
    jax.block_until_ready((mean, std))

    # sanity check against pure-JAX reference (unpadded params)
    ref_mean, ref_std = reference_forward(x, params)
    assert mean.shape == (batch, output_size) and std.shape == (batch, output_size)
    assert jnp.allclose(mean, ref_mean, atol=1e-5, rtol=1e-5)
    assert jnp.allclose(std, ref_std, atol=1e-5, rtol=1e-5)

    print("KERNEL_OK")
</pallas_src>

<mosaic_0001>
module attributes {stable_mosaic.version = 11 : i64} {
  func.func @behavior_kernel(%arg0: i32, %arg1: memref<8x128xf32, #tpu.memory_space<vmem>>, %arg2: memref<128x128xf32, #tpu.memory_space<vmem>>, %arg3: memref<1x128xf32, #tpu.memory_space<vmem>>, %arg4: memref<128x128xf32, #tpu.memory_space<vmem>>, %arg5: memref<1x128xf32, #tpu.memory_space<vmem>>, %arg6: memref<128x256xf32, #tpu.memory_space<vmem>>, %arg7: memref<1x256xf32, #tpu.memory_space<vmem>>, %arg8: memref<8x128xf32, #tpu.memory_space<vmem>>, %arg9: memref<8x128xf32, #tpu.memory_space<vmem>>) attributes {dimension_semantics = [#tpu.dimension_semantics<parallel>], iteration_bounds = array<i64: 1>, scalar_prefetch = 0 : i64, scratch_operands = 0 : i64, tpu.core_type = #tpu.core_type<tc>, window_params = [{transform_indices = @transform_0, window_bounds = array<i64: 8, 128>}, {pipeline_mode = #tpu.pipeline_mode<synchronous>, transform_indices = @transform_1, window_bounds = array<i64: 128, 128>}, {pipeline_mode = #tpu.pipeline_mode<synchronous>, transform_indices = @transform_2, window_bounds = array<i64: 1, 128>}, {pipeline_mode = #tpu.pipeline_mode<synchronous>, transform_indices = @transform_3, window_bounds = array<i64: 128, 128>}, {pipeline_mode = #tpu.pipeline_mode<synchronous>, transform_indices = @transform_4, window_bounds = array<i64: 1, 128>}, {pipeline_mode = #tpu.pipeline_mode<synchronous>, transform_indices = @transform_5, window_bounds = array<i64: 128, 256>}, {pipeline_mode = #tpu.pipeline_mode<synchronous>, transform_indices = @transform_6, window_bounds = array<i64: 1, 256>}, {transform_indices = @transform_7, window_bounds = array<i64: 8, 128>}, {transform_indices = @transform_8, window_bounds = array<i64: 8, 128>}]} {
    %c0 = arith.constant 0 : index
    %c0_0 = arith.constant 0 : index
    %0 = vector.load %arg1[%c0, %c0_0] : memref<8x128xf32, #tpu.memory_space<vmem>>, vector<8x128xf32>
    %c0_1 = arith.constant 0 : index
    %c0_2 = arith.constant 0 : index
    %1 = vector.load %arg2[%c0_1, %c0_2] : memref<128x128xf32, #tpu.memory_space<vmem>>, vector<128x128xf32>
    %cst = arith.constant dense<0.000000e+00> : vector<8x128xf32>
    %2 = tpu.matmul %0, %1, %cst {dimension_numbers = #tpu.dot_dimension_numbers<[1], [0], [0], [1], [0, 0, 1, 1], [], []>} : vector<8x128xf32>, vector<128x128xf32>, vector<8x128xf32> -> vector<8x128xf32>
    %c0_3 = arith.constant 0 : index
    %c0_4 = arith.constant 0 : index
    %3 = vector.load %arg3[%c0_3, %c0_4] : memref<1x128xf32, #tpu.memory_space<vmem>>, vector<1x128xf32>
    %4 = vector.broadcast %3 : vector<1x128xf32> to vector<8x128xf32>
    %5 = arith.addf %2, %4 : vector<8x128xf32>
    %cst_5 = arith.constant 0.000000e+00 : f32
    %6 = vector.broadcast %cst_5 : f32 to vector<8x128xf32>
    %7 = arith.maximumf %5, %6 : vector<8x128xf32>
    %c0_6 = arith.constant 0 : index
    %c0_7 = arith.constant 0 : index
    %8 = vector.load %arg4[%c0_6, %c0_7] : memref<128x128xf32, #tpu.memory_space<vmem>>, vector<128x128xf32>
    %cst_8 = arith.constant dense<0.000000e+00> : vector<8x128xf32>
    %9 = tpu.matmul %7, %8, %cst_8 {dimension_numbers = #tpu.dot_dimension_numbers<[1], [0], [0], [1], [0, 0, 1, 1], [], []>} : vector<8x128xf32>, vector<128x128xf32>, vector<8x128xf32> -> vector<8x128xf32>
    %c0_9 = arith.constant 0 : index
    %c0_10 = arith.constant 0 : index
    %10 = vector.load %arg5[%c0_9, %c0_10] : memref<1x128xf32, #tpu.memory_space<vmem>>, vector<1x128xf32>
    %11 = vector.broadcast %10 : vector<1x128xf32> to vector<8x128xf32>
    %12 = arith.addf %9, %11 : vector<8x128xf32>
    %cst_11 = arith.constant 0.000000e+00 : f32
    %13 = vector.broadcast %cst_11 : f32 to vector<8x128xf32>
    %14 = arith.maximumf %12, %13 : vector<8x128xf32>
    %c0_12 = arith.constant 0 : index
    %c0_13 = arith.constant 0 : index
    %15 = vector.load %arg6[%c0_12, %c0_13] : memref<128x256xf32, #tpu.memory_space<vmem>>, vector<128x256xf32>
    %cst_14 = arith.constant dense<0.000000e+00> : vector<8x256xf32>
    %16 = tpu.matmul %14, %15, %cst_14 {dimension_numbers = #tpu.dot_dimension_numbers<[1], [0], [0], [1], [0, 0, 1, 1], [], []>} : vector<8x128xf32>, vector<128x256xf32>, vector<8x256xf32> -> vector<8x256xf32>
    %c0_15 = arith.constant 0 : index
    %c0_16 = arith.constant 0 : index
    %17 = vector.load %arg7[%c0_15, %c0_16] : memref<1x256xf32, #tpu.memory_space<vmem>>, vector<1x256xf32>
    %18 = vector.broadcast %17 : vector<1x256xf32> to vector<8x256xf32>
    %19 = arith.addf %16, %18 : vector<8x256xf32>
    %20 = vector.extract_strided_slice %19 {offsets = [0, 0], sizes = [8, 128], strides = [1, 1]} : vector<8x256xf32> to vector<8x128xf32>
    %c0_17 = arith.constant 0 : index
    %c0_18 = arith.constant 0 : index
    %21 = vector.load %arg8[%c0_17, %c0_18] : memref<8x128xf32, #tpu.memory_space<vmem>>, vector<8x128xf32>
    tpu.vector_store %arg8[%c0_17, %c0_18], %20 {strides = array<i32>} : memref<8x128xf32, #tpu.memory_space<vmem>>, vector<8x128xf32>,
    %22 = vector.extract_strided_slice %19 {offsets = [0, 128], sizes = [8, 128], strides = [1, 1]} : vector<8x256xf32> to vector<8x128xf32>
    %cst_19 = arith.constant -2.000000e+01 : f32
    %cst_20 = arith.constant 2.000000e+00 : f32
    %23 = vector.broadcast %cst_19 : f32 to vector<8x128xf32>
    %24 = arith.maximumf %23, %22 : vector<8x128xf32>
    %25 = vector.broadcast %cst_20 : f32 to vector<8x128xf32>
    %26 = arith.minimumf %25, %24 : vector<8x128xf32>
    %27 = math.exp %26 : vector<8x128xf32>
    %c0_21 = arith.constant 0 : index
    %c0_22 = arith.constant 0 : index
    %28 = vector.load %arg9[%c0_21, %c0_22] : memref<8x128xf32, #tpu.memory_space<vmem>>, vector<8x128xf32>
    tpu.vector_store %arg9[%c0_21, %c0_22], %27 {strides = array<i32>} : memref<8x128xf32, #tpu.memory_space<vmem>>, vector<8x128xf32>,
    return
  }
  func.func @transform_0(%arg0: i32) -> (i32, i32) {
    %c0_i32 = arith.constant 0 : i32
    %c0_i32_0 = arith.constant 0 : i32
    return %arg0, %c0_i32 : i32, i32
  }
  func.func @transform_1(%arg0: i32) -> (i32, i32) {
    %c0_i32 = arith.constant 0 : i32
    %c0_i32_0 = arith.constant 0 : i32
    %c0_i32_1 = arith.constant 0 : i32
    return %c0_i32, %c0_i32_0 : i32, i32
  }
  func.func @transform_2(%arg0: i32) -> (i32, i32) {
    %c0_i32 = arith.constant 0 : i32
    %c0_i32_0 = arith.constant 0 : i32
    %c0_i32_1 = arith.constant 0 : i32
    return %c0_i32, %c0_i32_0 : i32, i32
  }
  func.func @transform_3(%arg0: i32) -> (i32, i32) {
    %c0_i32 = arith.constant 0 : i32
    %c0_i32_0 = arith.constant 0 : i32
    %c0_i32_1 = arith.constant 0 : i32
    return %c0_i32, %c0_i32_0 : i32, i32
  }
  func.func @transform_4(%arg0: i32) -> (i32, i32) {
    %c0_i32 = arith.constant 0 : i32
    %c0_i32_0 = arith.constant 0 : i32
    %c0_i32_1 = arith.constant 0 : i32
    return %c0_i32, %c0_i32_0 : i32, i32
  }
  func.func @transform_5(%arg0: i32) -> (i32, i32) {
    %c0_i32 = arith.constant 0 : i32
    %c0_i32_0 = arith.constant 0 : i32
    %c0_i32_1 = arith.constant 0 : i32
    return %c0_i32, %c0_i32_0 : i32, i32
  }
  func.func @transform_6(%arg0: i32) -> (i32, i32) {
    %c0_i32 = arith.constant 0 : i32
    %c0_i32_0 = arith.constant 0 : i32
    %c0_i32_1 = arith.constant 0 : i32
    return %c0_i32, %c0_i32_0 : i32, i32
  }
  func.func @transform_7(%arg0: i32) -> (i32, i32) {
    %c0_i32 = arith.constant 0 : i32
    %c0_i32_0 = arith.constant 0 : i32
    return %arg0, %c0_i32 : i32, i32
  }
  func.func @transform_8(%arg0: i32) -> (i32, i32) {
    %c0_i32 = arith.constant 0 : i32
    %c0_i32_0 = arith.constant 0 : i32
    return %arg0, %c0_i32 : i32, i32
  }
}

</mosaic_0001>

<llo_original>
// kernel: tpu_custom_call.1
$region0: #{tpu_custom_call.1}
  #allocation0 [shape = 'u32[]', space=smem, size = 0x4, offset = 0x4, fixed_abs, tag = 'smem constant byte address 0x4 - core index']
  #allocation1 [shape = 'u32[72,128]{1,0:T(1,128)}', space=vmem, size = 0x9000, scoped, tag = 'internal scratch']
  %s0 = inlined_call_operand.hbm [shape: f32[8,128], index: 0, kind: input, shape index: {}]
  %s1 = inlined_call_operand.hbm [shape: f32[128,128], index: 1, kind: input, shape index: {}]
  %s2 = inlined_call_operand.vmem [shape: f32[1,128], index: 2, kind: input, shape index: {}]
  %s3 = inlined_call_operand.hbm [shape: f32[128,128], index: 3, kind: input, shape index: {}]
  %s4 = inlined_call_operand.hbm [shape: f32[1,128], index: 4, kind: input, shape index: {}]
  %s5 = inlined_call_operand.hbm [shape: f32[128,256], index: 5, kind: input, shape index: {}]
  %s6 = inlined_call_operand.vmem [shape: f32[1,256], index: 6, kind: input, shape index: {}]
  %s7 = inlined_call_operand.hbm [shape: f32[8,128], index: 7, kind: output, shape index: {0}]
  %s8 = inlined_call_operand.hbm [shape: f32[8,128], index: 8, kind: output, shape index: {1}]
  %9 = xla_tuple %s7, %s8
  %s10 = sld [smem:[#allocation0]]
  $region66: #{tpu_custom_call.1} parent=0
    _
  %s12 = ssub.s32 1, %s10
  %s13 = scalar_select 0, %s12, %s10
  $region1: #{tpu_custom_call.1} parent=0
    #allocation2 [shape = 'u8[4096]{0}', space=vmem, size = 0x1000, scoped, tag = 'input window, operand 0, single buffered']
    #allocation3 [shape = 's32[1]{0}', space=sflag, size = 0x4, scoped, tag = 'scoped memory for tpu_custom_call.1']
    #allocation4 [shape = 's32[1]{0}', space=sflag, size = 0x4, scoped, tag = 'scoped memory for tpu_custom_call.1']
    #allocation5 [shape = 'u8[65536]{0}', space=vmem, size = 0x10000, scoped, tag = 'input window, operand 1, single buffered']
    #allocation6 [shape = 's32[1]{0}', space=sflag, size = 0x4, scoped, tag = 'scoped memory for tpu_custom_call.1']
    #allocation7 [shape = 'u8[65536]{0}', space=vmem, size = 0x10000, scoped, tag = 'input window, operand 3, single buffered']
    #allocation8 [shape = 'u8[512]{0}', space=vmem, size = 0x400, scoped, tag = 'input window, operand 4, single buffered']
    #allocation9 [shape = 's32[1]{0}', space=sflag, size = 0x4, scoped, tag = 'scoped memory for tpu_custom_call.1']
    #allocation10 [shape = 'u8[131072]{0}', space=vmem, size = 0x20000, scoped, tag = 'input window, operand 5, single buffered']
    #allocation11 [shape = 'u8[4096]{0}', space=vmem, size = 0x1000, scoped, tag = 'output window, operand 0, single buffered']
    #allocation12 [shape = 'u8[4096]{0}', space=vmem, size = 0x1000, scoped, tag = 'output window, operand 1, single buffered']
    #allocation13 [shape = 's32[1]{0}', space=sflag, size = 0x4, scoped, tag = 'scoped memory for tpu_custom_call.1']
    %14 = vsyncpa [#allocation3], 0
    %15 = vsyncpa [#allocation6], 0
    %16 = vsyncpa [#allocation9], 0
    %17 = vsyncpa [#allocation4], 0
    %18 = vsyncpa [#allocation13], 0
    // Predicated region
    $region2: #{tpu_custom_call.1} parent=1 // pred_check
      _
    $region3: #{tpu_custom_call.1} parent=1 // pred_check_branch
      %20 = sbr.rel (0) target = $region5
    $region4: #{tpu_custom_call.1} parent=1 // pred_region
      %22 = vsyncadd [#allocation3], 0
      %s24 = sshll.u32 %s0, 4
      %s25 = int_to_ptr.hbm [resolvable:$true] %s24
      %s26 = sshll.u32 [#allocation2], 4
      %s27 = int_to_ptr.vmem [resolvable:$true] %s26
      %29 = dma.hbm_to_vmem [thread:$0]  %s25, 128, %s27, [#allocation3]
    $region5: #{tpu_custom_call.1} parent=1 // pred_fallthru
      _
    // Predicated region
    $region6: #{tpu_custom_call.1} parent=1 // pred_check
      _
    $region7: #{tpu_custom_call.1} parent=1 // pred_check_branch
      %31 = sbr.rel (0) target = $region9
    $region8: #{tpu_custom_call.1} parent=1 // pred_region
      %33 = vsyncadd [#allocation6], 0
      %s34 = sshll.u32 %s1, 4
      %s35 = int_to_ptr.hbm [resolvable:$true] %s34
      %s36 = sshll.u32 [#allocation5], 4
      %s37 = int_to_ptr.vmem [resolvable:$true] %s36
      %42 = dma.hbm_to_vmem [thread:$0]  %s35, 2048, %s37, [#allocation6], 128, 128, 8
    $region9: #{tpu_custom_call.1} parent=1 // pred_fallthru
      _
    // Predicated region
    $region10: #{tpu_custom_call.1} parent=1 // pred_check
      _
    $region11: #{tpu_custom_call.1} parent=1 // pred_check_branch
      %44 = sbr.rel (0) target = $region13
    $region12: #{tpu_custom_call.1} parent=1 // pred_region
      _
    $region13: #{tpu_custom_call.1} parent=1 // pred_fallthru
      _
    // Predicated region
    $region14: #{tpu_custom_call.1} parent=1 // pred_check
      _
    $region15: #{tpu_custom_call.1} parent=1 // pred_check_branch
      %46 = sbr.rel (0) target = $region17
    $region16: #{tpu_custom_call.1} parent=1 // pred_region
      %48 = vsyncadd [#allocation6], 0
      %s49 = sshll.u32 %s3, 4
      %s50 = int_to_ptr.hbm [resolvable:$true] %s49
      %s51 = sshll.u32 [#allocation7], 4
      %s52 = int_to_ptr.vmem [resolvable:$true] %s51
      %57 = dma.hbm_to_vmem [thread:$0]  %s50, 2048, %s52, [#allocation6], 128, 128, 8
    $region17: #{tpu_custom_call.1} parent=1 // pred_fallthru
      _
    // Predicated region
    $region18: #{tpu_custom_call.1} parent=1 // pred_check
      _
    $region19: #{tpu_custom_call.1} parent=1 // pred_check_branch
      %59 = sbr.rel (0) target = $region21
    $region20: #{tpu_custom_call.1} parent=1 // pred_region
      %61 = vsyncadd [#allocation9], 0
      %s63 = sshll.u32 %s4, 4
      %s64 = int_to_ptr.hbm [resolvable:$true] %s63
      %s65 = sshll.u32 [#allocation8], 4
      %s66 = int_to_ptr.vmem [resolvable:$true] %s65
      %68 = dma.hbm_to_vmem [thread:$0]  %s64, 16, %s66, [#allocation9]
    $region21: #{tpu_custom_call.1} parent=1 // pred_fallthru
      _
    // Predicated region
    $region22: #{tpu_custom_call.1} parent=1 // pred_check
      _
    $region23: #{tpu_custom_call.1} parent=1 // pred_check_branch
      %70 = sbr.rel (0) target = $region25
    $region24: #{tpu_custom_call.1} parent=1 // pred_region
      %72 = vsyncadd [#allocation9], 0
      %s73 = sshll.u32 %s5, 4
      %s74 = int_to_ptr.hbm [resolvable:$true] %s73
      %s75 = sshll.u32 [#allocation10], 4
      %s76 = int_to_ptr.vmem [resolvable:$true] %s75
      %81 = dma.hbm_to_vmem [thread:$0]  %s74, 4096, %s76, [#allocation9], 256, 256, 16
    $region25: #{tpu_custom_call.1} parent=1 // pred_fallthru
      _
    // Predicated region
    $region26: #{tpu_custom_call.1} parent=1 // pred_check
      _
    $region27: #{tpu_custom_call.1} parent=1 // pred_check_branch
      %83 = sbr.rel (0) target = $region29
    $region28: #{tpu_custom_call.1} parent=1 // pred_region
      _
    $region29: #{tpu_custom_call.1} parent=1 // pred_fallthru
      _
    // Predicated region
    $region30: #{tpu_custom_call.1} parent=1 // pred_check
      _
    $region31: #{tpu_custom_call.1} parent=1 // pred_check_branch
      %85 = sbr.rel (0) target = $region33
    $region32: #{tpu_custom_call.1} parent=1 // pred_region
      %87 = dma.done [#allocation3], 128
    $region33: #{tpu_custom_call.1} parent=1 // pred_fallthru
      _
    // Predicated region
    $region34: #{tpu_custom_call.1} parent=1 // pred_check
      _
    $region35: #{tpu_custom_call.1} parent=1 // pred_check_branch
      %89 = sbr.rel (0) target = $region37
    $region36: #{tpu_custom_call.1} parent=1 // pred_region
      %91 = dma.done [#allocation6], 2048
    $region37: #{tpu_custom_call.1} parent=1 // pred_fallthru
      _
    // Predicated region
    $region38: #{tpu_custom_call.1} parent=1 // pred_check
      _
    $region39: #{tpu_custom_call.1} parent=1 // pred_check_branch
      %93 = sbr.rel (0) target = $region41
    $region40: #{tpu_custom_call.1} parent=1 // pred_region
      %95 = dma.done [#allocation6], 2048
    $region41: #{tpu_custom_call.1} parent=1 // pred_fallthru
      _
    // Predicated region
    $region42: #{tpu_custom_call.1} parent=1 // pred_check
      _
    $region43: #{tpu_custom_call.1} parent=1 // pred_check_branch
      %97 = sbr.rel (0) target = $region45
    $region44: #{tpu_custom_call.1} parent=1 // pred_region
      %99 = dma.done [#allocation9], 16
    $region45: #{tpu_custom_call.1} parent=1 // pred_fallthru
      _
    // Predicated region
    $region46: #{tpu_custom_call.1} parent=1 // pred_check
      _
    $region47: #{tpu_custom_call.1} parent=1 // pred_check_branch
      %101 = sbr.rel (0) target = $region49
    $region48: #{tpu_custom_call.1} parent=1 // pred_region
      %103 = dma.done [#allocation9], 4096
    $region49: #{tpu_custom_call.1} parent=1 // pred_fallthru
      _
    %v104 = vld [vmem:[#allocation2] sm:$0xff]
    %v105 = vld [vmem:[#allocation5] sm:$0xff]
    %v106 = vld [vmem:[#allocation5 + $0x8] sm:$0xff]
    %v107 = vld [vmem:[#allocation5 + $0x10] sm:$0xff]
    %v108 = vld [vmem:[#allocation5 + $0x18] sm:$0xff]
    %v109 = vld [vmem:[#allocation5 + $0x20] sm:$0xff]
    %v110 = vld [vmem:[#allocation5 + $0x28] sm:$0xff]
    %v111 = vld [vmem:[#allocation5 + $0x30] sm:$0xff]
    %v112 = vld [vmem:[#allocation5 + $0x38] sm:$0xff]
    %v113 = vld [vmem:[#allocation5 + $0x40] sm:$0xff]
    %v114 = vld [vmem:[#allocation5 + $0x48] sm:$0xff]
    %v115 = vld [vmem:[#allocation5 + $0x50] sm:$0xff]
    %v116 = vld [vmem:[#allocation5 + $0x58] sm:$0xff]
    %v117 = vld [vmem:[#allocation5 + $0x60] sm:$0xff]
    %v118 = vld [vmem:[#allocation5 + $0x68] sm:$0xff]
    %v119 = vld [vmem:[#allocation5 + $0x70] sm:$0xff]
    %v120 = vld [vmem:[#allocation5 + $0x78] sm:$0xff]
    %v121 = vld [vmem:[%s2] sm:$0x1]
    %v123 = vperm.slane %v121, 0
    %125 = vmatpush.msra.mxu0 %v120
    %126 = vmatpush.msra.mxu0 %v119
    %127 = vmatpush.msra.mxu0 %v118
    %128 = vmatpush.msra.mxu0 %v117
    %129 = vmatpush.msra.mxu0 %v116
    %130 = vmatpush.msra.mxu0 %v115
    %131 = vmatpush.msra.mxu0 %v114
    %132 = vmatpush.msra.mxu0 %v113
    %133 = vmatpush.msra.mxu0 %v112
    %134 = vmatpush.msra.mxu0 %v111
    %135 = vmatpush.msra.mxu0 %v110
    %136 = vmatpush.msra.mxu0 %v109
    %137 = vmatpush.msra.mxu0 %v108
    %138 = vmatpush.msra.mxu0 %v107
    %139 = vmatpush.msra.mxu0 %v106
    %140 = vmatpush.msra.mxu0 %v105
    %141 = vmatmul.f32.gmra.mxu0 %v104
    %v142 = vpop.f32.mrf.mxu0
    %v143 = vadd.f32 %v123, %v142
    %144 = vdwg.mxu0
    %v145 = vmax.f32 %v143, 0.0
    %v146 = vld [vmem:[#allocation7] sm:$0xff]
    %v147 = vld [vmem:[#allocation7 + $0x8] sm:$0xff]
    %v148 = vld [vmem:[#allocation7 + $0x10] sm:$0xff]
    %v149 = vld [vmem:[#allocation7 + $0x18] sm:$0xff]
    %v150 = vld [vmem:[#allocation7 + $0x20] sm:$0xff]
    %v151 = vld [vmem:[#allocation7 + $0x28] sm:$0xff]
    %v152 = vld [vmem:[#allocation7 + $0x30] sm:$0xff]
    %v153 = vld [vmem:[#allocation7 + $0x38] sm:$0xff]
    %v154 = vld [vmem:[#allocation7 + $0x40] sm:$0xff]
    %v155 = vld [vmem:[#allocation7 + $0x48] sm:$0xff]
    %v156 = vld [vmem:[#allocation7 + $0x50] sm:$0xff]
    %v157 = vld [vmem:[#allocation7 + $0x58] sm:$0xff]
    %v158 = vld [vmem:[#allocation7 + $0x60] sm:$0xff]
    %v159 = vld [vmem:[#allocation7 + $0x68] sm:$0xff]
    %v160 = vld [vmem:[#allocation7 + $0x70] sm:$0xff]
    %v161 = vld [vmem:[#allocation7 + $0x78] sm:$0xff]
    %v162 = vld [vmem:[#allocation8] sm:$0x1]
    %v164 = vperm.slane %v162, 0
    %166 = vmatpush.msra.mxu0 %v161
    %167 = vmatpush.msra.mxu0 %v160
    %168 = vmatpush.msra.mxu0 %v159
    %169 = vmatpush.msra.mxu0 %v158
    %170 = vmatpush.msra.mxu0 %v157
    %171 = vmatpush.msra.mxu0 %v156
    %172 = vmatpush.msra.mxu0 %v155
    %173 = vmatpush.msra.mxu0 %v154
    %174 = vmatpush.msra.mxu0 %v153
    %175 = vmatpush.msra.mxu0 %v152
    %176 = vmatpush.msra.mxu0 %v151
    %177 = vmatpush.msra.mxu0 %v150
    %178 = vmatpush.msra.mxu0 %v149
    %179 = vmatpush.msra.mxu0 %v148
    %180 = vmatpush.msra.mxu0 %v147
    %181 = vmatpush.msra.mxu0 %v146
    %182 = vmatmul.f32.gmra.mxu0 %v145
    %v183 = vpop.f32.mrf.mxu0
    %v184 = vadd.f32 %v164, %v183
    %185 = vdwg.mxu0
    %v186 = vmax.f32 %v184, 0.0
    %v187 = vld [vmem:[#allocation10] sm:$0xff]
    %v188 = vld [vmem:[#allocation10 + $0x8] sm:$0xff]
    %v189 = vld [vmem:[#allocation10 + $0x10] sm:$0xff]
    %v190 = vld [vmem:[#allocation10 + $0x18] sm:$0xff]
    %v191 = vld [vmem:[#allocation10 + $0x20] sm:$0xff]
    %v192 = vld [vmem:[#allocation10 + $0x28] sm:$0xff]
    %v193 = vld [vmem:[#allocation10 + $0x30] sm:$0xff]
    %v194 = vld [vmem:[#allocation10 + $0x38] sm:$0xff]
    %v195 = vld [vmem:[#allocation10 + $0x40] sm:$0xff]
    %v196 = vld [vmem:[#allocation10 + $0x48] sm:$0xff]
    %v197 = vld [vmem:[#allocation10 + $0x50] sm:$0xff]
    %v198 = vld [vmem:[#allocation10 + $0x58] sm:$0xff]
    %v199 = vld [vmem:[#allocation10 + $0x60] sm:$0xff]
    %v200 = vld [vmem:[#allocation10 + $0x68] sm:$0xff]
    %v201 = vld [vmem:[#allocation10 + $0x70] sm:$0xff]
    %v202 = vld [vmem:[#allocation10 + $0x78] sm:$0xff]
    %v203 = vld [vmem:[#allocation10 + $0x80] sm:$0xff]
    %v204 = vld [vmem:[#allocation10 + $0x88] sm:$0xff]
    %v205 = vld [vmem:[#allocation10 + $0x90] sm:$0xff]
    %v206 = vld [vmem:[#allocation10 + $0x98] sm:$0xff]
    %v207 = vld [vmem:[#allocation10 + $0xa0] sm:$0xff]
    %v208 = vld [vmem:[#allocation10 + $0xa8] sm:$0xff]
    %v209 = vld [vmem:[#allocation10 + $0xb0] sm:$0xff]
    %v210 = vld [vmem:[#allocation10 + $0xb8] sm:$0xff]
    %v211 = vld [vmem:[#allocation10 + $0xc0] sm:$0xff]
    %v212 = vld [vmem:[#allocation10 + $0xc8] sm:$0xff]
    %v213 = vld [vmem:[#allocation10 + $0xd0] sm:$0xff]
    %v214 = vld [vmem:[#allocation10 + $0xd8] sm:$0xff]
    %v215 = vld [vmem:[#allocation10 + $0xe0] sm:$0xff]
    %v216 = vld [vmem:[#allocation10 + $0xe8] sm:$0xff]
    %v217 = vld [vmem:[#allocation10 + $0xf0] sm:$0xff]
    %v218 = vld [vmem:[#allocation10 + $0xf8] sm:$0xff]
    %v219 = vld [vmem:[%s6] sm:$0x3]
    %v221 = vperm.slane %v219, 0
    %v222 = vperm.slane %v219, 1
    %225 = vmatpush.msra.mxu0 %v217
    %226 = vmatpush.msra.mxu0 %v215
    %227 = vmatpush.msra.mxu0 %v213
    %228 = vmatpush.msra.mxu0 %v211
    %229 = vmatpush.msra.mxu0 %v209
    %230 = vmatpush.msra.mxu0 %v207
    %231 = vmatpush.msra.mxu0 %v205
    %232 = vmatpush.msra.mxu0 %v203
    %233 = vmatpush.msra.mxu0 %v201
    %234 = vmatpush.msra.mxu0 %v199
    %235 = vmatpush.msra.mxu0 %v197
    %236 = vmatpush.msra.mxu0 %v195
    %237 = vmatpush.msra.mxu0 %v193
    %238 = vmatpush.msra.mxu0 %v191
    %239 = vmatpush.msra.mxu0 %v189
    %240 = vmatpush.msra.mxu0 %v187
    %241 = vmatmul.f32.gmra.mxu0 %v186
    %v242 = vpop.f32.mrf.mxu0
    %v243 = vadd.f32 %v221, %v242
    %244 = vdwg.mxu0
    %245 = vmatpush.msra.mxu0 %v218
    %246 = vmatpush.msra.mxu0 %v216
    %247 = vmatpush.msra.mxu0 %v214
    %248 = vmatpush.msra.mxu0 %v212
    %249 = vmatpush.msra.mxu0 %v210
    %250 = vmatpush.msra.mxu0 %v208
    %251 = vmatpush.msra.mxu0 %v206
    %252 = vmatpush.msra.mxu0 %v204
    %253 = vmatpush.msra.mxu0 %v202
    %254 = vmatpush.msra.mxu0 %v200
    %255 = vmatpush.msra.mxu0 %v198
    %256 = vmatpush.msra.mxu0 %v196
    %257 = vmatpush.msra.mxu0 %v194
    %258 = vmatpush.msra.mxu0 %v192
    %259 = vmatpush.msra.mxu0 %v190
    %260 = vmatpush.msra.mxu0 %v188
    %261 = vmatmul.f32.gmra.mxu0 %v186
    %v262 = vpop.f32.mrf.mxu0
    %v263 = vadd.f32 %v222, %v262
    %264 = vdwg.mxu0
    %265 = vst [vmem:[#allocation11] sm:$0xff] %v243
    %v266 = vmax.f32 %v263, -20.0
    %v267 = vmin.f32 %v266, 2.0
    %v268 = vmul.f32 %v267, 1.442695
    %v269 = vpow.pop %v268
    %270 = vst [vmem:[#allocation12] sm:$0xff] %v269
    // Predicated region
    $region50: #{tpu_custom_call.1} parent=1 // pred_check
      _
    $region51: #{tpu_custom_call.1} parent=1 // pred_check_branch
      %272 = sbr.rel (0) target = $region53
    $region52: #{tpu_custom_call.1} parent=1 // pred_region
      %274 = vsyncadd [#allocation4], 0
      %s276 = sshll.u32 [#allocation11], 4
      %s277 = int_to_ptr.vmem [resolvable:$true] %s276
      %s278 = sshll.u32 %s7, 4
      %s279 = int_to_ptr.hbm [resolvable:$true] %s278
      %281 = dma.vmem_to_hbm [thread:$0]  %s277, 128, %s279, [#allocation4]
    $region53: #{tpu_custom_call.1} parent=1 // pred_fallthru
      _
    // Predicated region
    $region54: #{tpu_custom_call.1} parent=1 // pred_check
      _
    $region55: #{tpu_custom_call.1} parent=1 // pred_check_branch
      %283 = sbr.rel (0) target = $region57
    $region56: #{tpu_custom_call.1} parent=1 // pred_region
      %285 = vsyncadd [#allocation13], 0
      %s287 = sshll.u32 [#allocation12], 4
      %s288 = int_to_ptr.vmem [resolvable:$true] %s287
      %s289 = sshll.u32 %s8, 4
      %s290 = int_to_ptr.hbm [resolvable:$true] %s289
      %292 = dma.vmem_to_hbm [thread:$0]  %s288, 128, %s290, [#allocation13]
    $region57: #{tpu_custom_call.1} parent=1 // pred_fallthru
      _
    // Predicated region
    $region58: #{tpu_custom_call.1} parent=1 // pred_check
      _
    $region59: #{tpu_custom_call.1} parent=1 // pred_check_branch
      %294 = sbr.rel (0) target = $region61
    $region60: #{tpu_custom_call.1} parent=1 // pred_region
      %296 = dma.done [#allocation4], 128
    $region61: #{tpu_custom_call.1} parent=1 // pred_fallthru
      _
    // Predicated region
    $region62: #{tpu_custom_call.1} parent=1 // pred_check
      _
    $region63: #{tpu_custom_call.1} parent=1 // pred_check_branch
      %298 = sbr.rel (0) target = $region65
    $region64: #{tpu_custom_call.1} parent=1 // pred_region
      %300 = dma.done [#allocation13], 128
    $region65: #{tpu_custom_call.1} parent=1 // pred_fallthru
      _
    %301 = vsyncpa [#allocation3], 1
    %302 = vsyncpa [#allocation6], 1
    %303 = vsyncpa [#allocation9], 1
    %304 = vsyncpa [#allocation4], 1
    %305 = vsyncpa [#allocation13], 1

</llo_original>
